<compile_context>
chip_gen: v7x
topology: tpu7x:2x2x1
jax: 0.10.0
libtpu: 0.0.40
codegen_flags: <defaults>
</compile_context>

<pallas_src>
import functools

import jax
import jax.numpy as jnp
from jax.experimental import pallas as pl
from jax.experimental.pallas import tpu as pltpu


def _round_up(x, m):
    return ((x + m - 1) // m) * m


def _vmem_budget():
    """(per-h-buffer bytes, scoped VMEM limit) chosen per TPU generation."""
    try:
        vmem = pltpu.get_tpu_info().vmem_capacity_bytes
    except Exception:
        vmem = 64 * 1024 * 1024                       # conservative (v7x-safe)
    if vmem >= 96 * 1024 * 1024:                      # v5e / v6e: 128 MiB VMEM
        return 12 * 1024 * 1024, 96 * 1024 * 1024
    return 4 * 1024 * 1024, 48 * 1024 * 1024          # v7x: 64 MiB VMEM


def concat_nonlinear_kernel(h_ref, e1_ref, e2_ref,
                            w1a_ref, w1b_ref, b1_ref, w2_ref, b2_ref,
                            scores_ref, vec_ref,
                            e1_acc, e2_acc):
    t = pl.program_id(1)
    nt = pl.num_programs(1)

    @pl.when(t == 0)
    def _():
        e1_acc[...] = jnp.full_like(e1_acc, -jnp.inf)
        e2_acc[...] = jnp.full_like(e2_acc, -jnp.inf)

    h = h_ref[...]                                 # [TB, TT, D] (input dtype)
    TB, TT, D = h.shape
    neg = jnp.asarray(-1000.0, dtype=h.dtype)

    # Indicators arrive lane-dense as [TB, TT]; broadcast over D in-kernel.
    # For strictly 0/1 indicators the select is exactly the reference
    # h*ind - 1000*(1-ind) (single VPU select, no full-size temporaries).
    e1 = e1_ref[...][:, :, None]                   # [TB, TT, 1]
    e2 = e2_ref[...][:, :, None]
    m1 = jnp.where(e1 > 0.0, h, neg).reshape(TB, TT // 8, 8, D)
    m2 = jnp.where(e2 > 0.0, h, neg).reshape(TB, TT // 8, 8, D)

    # Per-step partial max over whole sublane groups only (pure VPU vreg max);
    # the single cross-sublane (XLU) reduce is deferred to the last seq step.
    e1_acc[...] = jnp.maximum(e1_acc[...], m1.max(axis=1).astype(jnp.float32))
    e2_acc[...] = jnp.maximum(e2_acc[...], m2.max(axis=1).astype(jnp.float32))

    @pl.when(t == nt - 1)
    def _():
        e1_vec = e1_acc[...].max(axis=1)           # [TB, D]  one XLU reduce
        e2_vec = e2_acc[...].max(axis=1)
        # concat-free: [e1_vec, e2_vec] @ W1 == e1_vec @ W1[:D] + e2_vec @ W1[D:]
        hid = jnp.dot(e1_vec, w1a_ref[...], preferred_element_type=jnp.float32)
        hid = hid + jnp.dot(e2_vec, w1b_ref[...],
                            preferred_element_type=jnp.float32)
        hid = jnp.maximum(hid + b1_ref[...], 0.0)  # bias + ReLU
        # dropout = identity (eval mode)
        scores = jnp.dot(hid, w2_ref[...],
                         preferred_element_type=jnp.float32) + b2_ref[...]
        vec_ref[...] = hid.astype(vec_ref.dtype)
        scores_ref[...] = scores.astype(scores_ref.dtype)


def concat_nonlinear(h, e1_indicator, e2_indicator, w1, b1, w2, b2,
                     *, multi_label):
    B, T, D = h.shape
    dim = w1.shape[1]
    n_out = w2.shape[1]                            # num_rel + 1
    itemsize = h.dtype.itemsize

    h_budget, vmem_limit = _vmem_budget()

    # ---- tile sizing ------------------------------------------------------
    # Batch tile: large enough to fill MXU rows on the final matmul step and
    # cut per-grid-step overhead; capped so that (a) an 8-row seq slice of h
    # still fits the per-buffer budget for very large D and (b) the "parallel"
    # batch axis keeps >= 2 tiles (both v7x TensorCores busy) when B allows.
    TB = min(128, _round_up(B, 8))
    if _round_up(B, 8) > 8:
        TB = min(TB, _round_up(pl.cdiv(B, 2), 8))
    max_tb = max(8, (h_budget // (8 * D * itemsize)) // 8 * 8)
    TB = max(8, min(TB, max_tb))

    # Sequence tile: fill the per-buffer budget of the double-buffered h stream.
    max_tt = max(8, (h_budget // (TB * D * itemsize)) // 8 * 8)
    TT = min(_round_up(T, 8), max_tt)

    nb = pl.cdiv(B, TB)
    nt = pl.cdiv(T, TT)
    B_pad = nb * TB
    T_pad = nt * TT

    DIM_PAD = _round_up(dim, 128)                  # lane-dense hidden/vec slab
    NOUT_PAD = _round_up(n_out, 128)               # lane-dense scores slab

    # ---- small-tensor padding only (h itself is NOT padded) ---------------
    # Zero-padded indicators guarantee OOB h garbage is never selected.
    # Reshape to [nt, B_pad, TT] so the indicator BlockSpec's last dim equals
    # the full array dim (satisfies the (8,128) rule for any T / TT).
    e1_r = jnp.pad(e1_indicator, ((0, B_pad - B), (0, T_pad - T)))
    e1_r = e1_r.reshape(B_pad, nt, TT).transpose(1, 0, 2)
    e2_r = jnp.pad(e2_indicator, ((0, B_pad - B), (0, T_pad - T)))
    e2_r = e2_r.reshape(B_pad, nt, TT).transpose(1, 0, 2)

    # Split W1 outside the kernel (no in-kernel slice across an (8,128) tile
    # boundary for any D) and pad hidden/output dims to lane-dense 128: zero
    # W1/b1 columns give zero hid columns; zero W2 rows keep scores unchanged.
    w1a = jnp.pad(w1[:D], ((0, 0), (0, DIM_PAD - dim)))
    w1b = jnp.pad(w1[D:], ((0, 0), (0, DIM_PAD - dim)))
    b1_p = jnp.pad(b1, ((0, 0), (0, DIM_PAD - dim)))
    w2_p = jnp.pad(w2, ((0, DIM_PAD - dim), (0, NOUT_PAD - n_out)))
    b2_p = jnp.pad(b2, ((0, 0), (0, NOUT_PAD - n_out)))

    grid_spec = pltpu.PrefetchScalarGridSpec(
        num_scalar_prefetch=0,
        grid=(nb, nt),
        in_specs=[
            # streamed tensors: tiled over (batch, seq); h is unpadded.
            pl.BlockSpec((TB, TT, D), lambda i, t: (i, t, 0)),        # h
            pl.BlockSpec((None, TB, TT), lambda i, t: (t, i, 0)),     # e1 ind.
            pl.BlockSpec((None, TB, TT), lambda i, t: (t, i, 0)),     # e2 ind.
            # weights/biases: constant block index -> stay VMEM-resident
            pl.BlockSpec((D, DIM_PAD), lambda i, t: (0, 0)),          # W1[:D]
            pl.BlockSpec((D, DIM_PAD), lambda i, t: (0, 0)),          # W1[D:]
            pl.BlockSpec((1, DIM_PAD), lambda i, t: (0, 0)),          # b1
            pl.BlockSpec((DIM_PAD, NOUT_PAD), lambda i, t: (0, 0)),   # W2
            pl.BlockSpec((1, NOUT_PAD), lambda i, t: (0, 0)),         # b2
        ],
        out_specs=(
            pl.BlockSpec((TB, NOUT_PAD), lambda i, t: (i, 0)),        # scores
            pl.BlockSpec((TB, DIM_PAD), lambda i, t: (i, 0)),         # e1e2_vec
        ),
        scratch_shapes=[
            pltpu.VMEM((TB, 8, D), jnp.float32),   # e1 running partial max
            pltpu.VMEM((TB, 8, D), jnp.float32),   # e2 running partial max
        ],
    )

    cost = pl.CostEstimate(
        flops=(2 * B_pad * T_pad * D                    # masked max-pool
               + 2 * B_pad * (2 * D) * DIM_PAD          # layer1
               + 2 * B_pad * DIM_PAD * NOUT_PAD),       # layer2
        transcendentals=0,
        bytes_accessed=(B * T * D * itemsize            # h stream (unpadded)
                        + 4 * (2 * B_pad * T_pad        # indicators
                               + 2 * D * DIM_PAD + DIM_PAD
                               + DIM_PAD * NOUT_PAD + NOUT_PAD
                               + B_pad * (NOUT_PAD + DIM_PAD))),
    )

    scores_pad, vec_pad = pl.pallas_call(
        concat_nonlinear_kernel,
        out_shape=(
            jax.ShapeDtypeStruct((B_pad, NOUT_PAD), jnp.float32),
            jax.ShapeDtypeStruct((B_pad, DIM_PAD), jnp.float32),
        ),
        grid_spec=grid_spec,
        compiler_params=pltpu.CompilerParams(
            dimension_semantics=("parallel", "arbitrary"),
            vmem_limit_bytes=vmem_limit,
        ),
        cost_estimate=cost,
    )(h, e1_r, e2_r, w1a, w1b, b1_p, w2_p, b2_p)

    scores = scores_pad[:B, :n_out]
    e1e2_vec = vec_pad[:B, :dim]
    if multi_label:
        scores = scores[:, :-1]                  # drop the last relation column
    return scores, e1e2_vec


if __name__ == "__main__":
    # Small, deterministic config consistent with the module's forward.
    B, T, D = 2, 8, 32          # batch, text_length, encoder hidden size
    dim = 32                    # config['dim']
    num_rel = 4                 # len(relation_map)
    multi_label = True

    key = jax.random.PRNGKey(0)
    k_h, k_w1, k_b1, k_w2, k_b2 = jax.random.split(key, 5)

    # Synthetic encoder output.
    h = jax.random.normal(k_h, (B, T, D), dtype=jnp.float32)

    # Entity indicator masks (0/1 spans over the sequence).
    e1_pos = jnp.array([1, 3])
    e2_pos = jnp.array([5, 6])
    seq = jnp.arange(T)[None, :]
    e1_indicator = (seq == e1_pos[:, None]).astype(jnp.float32)    # [B, T]
    e2_indicator = (seq == e2_pos[:, None]).astype(jnp.float32)    # [B, T]
    # The masked-max-as-select trick requires strictly 0/1 indicators.
    assert bool(jnp.all((e1_indicator == 0) | (e1_indicator == 1)))
    assert bool(jnp.all((e2_indicator == 0) | (e2_indicator == 1)))

    # Deterministic parameter init (PyTorch Linear-style uniform(-k, k)),
    # stored pre-transposed as [in, out] so the kernel does x @ W + b.
    k1 = 1.0 / jnp.sqrt(2.0 * D)
    w1 = jax.random.uniform(k_w1, (2 * D, dim), jnp.float32, -k1, k1)
    b1 = jax.random.uniform(k_b1, (1, dim), jnp.float32, -k1, k1)
    k2 = 1.0 / jnp.sqrt(float(dim))
    w2 = jax.random.uniform(k_w2, (dim, num_rel + 1), jnp.float32, -k2, k2)
    b2 = jax.random.uniform(k_b2, (1, num_rel + 1), jnp.float32, -k2, k2)

    fn = jax.jit(functools.partial(concat_nonlinear, multi_label=multi_label))
    scores, e1e2_vec = fn(h, e1_indicator, e2_indicator, w1, b1, w2, b2)
    jax.block_until_ready((scores, e1e2_vec))

    # Pure-JAX reference (mirrors the torch module exactly).
    e1m = 1000.0 * (1.0 - e1_indicator)
    e2m = 1000.0 * (1.0 - e2_indicator)
    e1v = jnp.max(h * e1_indicator[:, :, None] - e1m[:, :, None], axis=1)
    e2v = jnp.max(h * e2_indicator[:, :, None] - e2m[:, :, None], axis=1)
    hid_ref = jnp.maximum(jnp.concatenate([e1v, e2v], -1) @ w1 + b1, 0.0)
    sc_ref = hid_ref @ w2 + b2
    if multi_label:
        sc_ref = sc_ref[:, :-1]
    assert scores.shape == sc_ref.shape, "scores shape mismatch"
    assert e1e2_vec.shape == hid_ref.shape, "vec shape mismatch"
    assert jnp.allclose(scores, sc_ref, atol=1e-5), "scores mismatch"
    assert jnp.allclose(e1e2_vec, hid_ref, atol=1e-5), "e1e2_vec mismatch"

    print("KERNEL_OK")
</pallas_src>

<mosaic_0001>
module attributes {stable_mosaic.version = 11 : i64} {
  func.func @concat_nonlinear_kernel(%arg0: i32, %arg1: i32, %arg2: memref<8x8x32xf32, #tpu.memory_space<vmem>>, %arg3: memref<1x8x8xf32, #tpu.memory_space<vmem>>, %arg4: memref<1x8x8xf32, #tpu.memory_space<vmem>>, %arg5: memref<32x128xf32, #tpu.memory_space<vmem>>, %arg6: memref<32x128xf32, #tpu.memory_space<vmem>>, %arg7: memref<1x128xf32, #tpu.memory_space<vmem>>, %arg8: memref<128x128xf32, #tpu.memory_space<vmem>>, %arg9: memref<1x128xf32, #tpu.memory_space<vmem>>, %arg10: memref<8x128xf32, #tpu.memory_space<vmem>>, %arg11: memref<8x128xf32, #tpu.memory_space<vmem>>, %arg12: memref<8x8x32xf32, #tpu.memory_space<vmem>>, %arg13: memref<8x8x32xf32, #tpu.memory_space<vmem>>) attributes {dimension_semantics = [#tpu.dimension_semantics<parallel>, #tpu.dimension_semantics<arbitrary>], iteration_bounds = array<i64: 1, 1>, scalar_prefetch = 0 : i64, scratch_operands = 2 : i64, tpu.core_type = #tpu.core_type<tc>, window_params = [{transform_indices = @transform_0, window_bounds = array<i64: 8, 8, 32>}, {transform_indices = @transform_1, window_bounds = array<i64: 1, 8, 8>}, {transform_indices = @transform_2, window_bounds = array<i64: 1, 8, 8>}, {pipeline_mode = #tpu.pipeline_mode<synchronous>, transform_indices = @transform_3, window_bounds = array<i64: 32, 128>}, {pipeline_mode = #tpu.pipeline_mode<synchronous>, transform_indices = @transform_4, window_bounds = array<i64: 32, 128>}, {pipeline_mode = #tpu.pipeline_mode<synchronous>, transform_indices = @transform_5, window_bounds = array<i64: 1, 128>}, {pipeline_mode = #tpu.pipeline_mode<synchronous>, transform_indices = @transform_6, window_bounds = array<i64: 128, 128>}, {pipeline_mode = #tpu.pipeline_mode<synchronous>, transform_indices = @transform_7, window_bounds = array<i64: 1, 128>}, {transform_indices = @transform_8, window_bounds = array<i64: 8, 128>}, {transform_indices = @transform_9, window_bounds = array<i64: 8, 128>}]} {
    %c0_i32 = arith.constant 0 : i32
    %0 = arith.cmpi eq, %arg1, %c0_i32 : i32
    %1 = arith.extui %0 : i1 to i32
    %c0_i32_0 = arith.constant 0 : i32
    %2 = arith.cmpi ne, %1, %c0_i32_0 : i32
    scf.if %2 {
      %cst_28 = arith.constant 0xFF800000 : f32
      %35 = vector.broadcast %cst_28 : f32 to vector<8x8x32xf32>
      %c0_29 = arith.constant 0 : index
      %c0_30 = arith.constant 0 : index
      %c0_31 = arith.constant 0 : index
      %36 = vector.load %arg12[%c0_29, %c0_30, %c0_31] : memref<8x8x32xf32, #tpu.memory_space<vmem>>, vector<8x8x32xf32>
      tpu.vector_store %arg12[%c0_29, %c0_30, %c0_31], %35 {strides = array<i32>} : memref<8x8x32xf32, #tpu.memory_space<vmem>>, vector<8x8x32xf32>,
      %cst_32 = arith.constant 0xFF800000 : f32
      %37 = vector.broadcast %cst_32 : f32 to vector<8x8x32xf32>
      %c0_33 = arith.constant 0 : index
      %c0_34 = arith.constant 0 : index
      %c0_35 = arith.constant 0 : index
      %38 = vector.load %arg13[%c0_33, %c0_34, %c0_35] : memref<8x8x32xf32, #tpu.memory_space<vmem>>, vector<8x8x32xf32>
      tpu.vector_store %arg13[%c0_33, %c0_34, %c0_35], %37 {strides = array<i32>} : memref<8x8x32xf32, #tpu.memory_space<vmem>>, vector<8x8x32xf32>,
    } else {
    }
    %c0 = arith.constant 0 : index
    %c0_1 = arith.constant 0 : index
    %c0_2 = arith.constant 0 : index
    %3 = vector.load %arg2[%c0, %c0_1, %c0_2] : memref<8x8x32xf32, #tpu.memory_space<vmem>>, vector<8x8x32xf32>
    %c0_3 = arith.constant 0 : index
    %c0_4 = arith.constant 0 : index
    %c0_5 = arith.constant 0 : index
    %4 = vector.load %arg3[%c0_3, %c0_4, %c0_5] : memref<1x8x8xf32, #tpu.memory_space<vmem>>, vector<1x8x8xf32>
    %5 = vector.shape_cast %4 : vector<1x8x8xf32> to vector<8x8xf32>
    %6 = vector.shape_cast %5 : vector<8x8xf32> to vector<8x8x1xf32>
    %c0_6 = arith.constant 0 : index
    %c0_7 = arith.constant 0 : index
    %c0_8 = arith.constant 0 : index
    %7 = vector.load %arg4[%c0_6, %c0_7, %c0_8] : memref<1x8x8xf32, #tpu.memory_space<vmem>>, vector<1x8x8xf32>
    %8 = vector.shape_cast %7 : vector<1x8x8xf32> to vector<8x8xf32>
    %9 = vector.shape_cast %8 : vector<8x8xf32> to vector<8x8x1xf32>
    %cst = arith.constant 0.000000e+00 : f32
    %10 = vector.broadcast %cst : f32 to vector<8x8x1xf32>
    %11 = arith.cmpf ogt, %6, %10 : vector<8x8x1xf32>
    %cst_9 = arith.constant -1.000000e+03 : f32
    %12 = vector.shape_cast %11 : vector<8x8x1xi1> to vector<8x8x1xi1>
    %13 = vector.broadcast %12 : vector<8x8x1xi1> to vector<8x8x32xi1>
    %14 = vector.broadcast %cst_9 : f32 to vector<8x8x32xf32>
    %15 = arith.select %13, %3, %14 : vector<8x8x32xi1>, vector<8x8x32xf32>
    %16 = vector.shape_cast %15 : vector<8x8x32xf32> to vector<8x1x8x32xf32>
    %cst_10 = arith.constant 0.000000e+00 : f32
    %17 = vector.broadcast %cst_10 : f32 to vector<8x8x1xf32>
    %18 = arith.cmpf ogt, %9, %17 : vector<8x8x1xf32>
    %cst_11 = arith.constant -1.000000e+03 : f32
    %19 = vector.shape_cast %18 : vector<8x8x1xi1> to vector<8x8x1xi1>
    %20 = vector.broadcast %19 : vector<8x8x1xi1> to vector<8x8x32xi1>
    %21 = vector.broadcast %cst_11 : f32 to vector<8x8x32xf32>
    %22 = arith.select %20, %3, %21 : vector<8x8x32xi1>, vector<8x8x32xf32>
    %23 = vector.shape_cast %22 : vector<8x8x32xf32> to vector<8x1x8x32xf32>
    %c0_12 = arith.constant 0 : index
    %c0_13 = arith.constant 0 : index
    %c0_14 = arith.constant 0 : index
    %24 = vector.load %arg12[%c0_12, %c0_13, %c0_14] : memref<8x8x32xf32, #tpu.memory_space<vmem>>, vector<8x8x32xf32>
    %cst_15 = arith.constant dense<0xFF800000> : vector<8x8x32xf32>
    %25 = vector.multi_reduction <maximumf>, %16, %cst_15 [1] : vector<8x1x8x32xf32> to vector<8x8x32xf32>
    %26 = arith.maximumf %24, %25 : vector<8x8x32xf32>
    %c0_16 = arith.constant 0 : index
    %c0_17 = arith.constant 0 : index
    %c0_18 = arith.constant 0 : index
    %27 = vector.load %arg12[%c0_16, %c0_17, %c0_18] : memref<8x8x32xf32, #tpu.memory_space<vmem>>, vector<8x8x32xf32>
    tpu.vector_store %arg12[%c0_16, %c0_17, %c0_18], %26 {strides = array<i32>} : memref<8x8x32xf32, #tpu.memory_space<vmem>>, vector<8x8x32xf32>,
    %c0_19 = arith.constant 0 : index
    %c0_20 = arith.constant 0 : index
    %c0_21 = arith.constant 0 : index
    %28 = vector.load %arg13[%c0_19, %c0_20, %c0_21] : memref<8x8x32xf32, #tpu.memory_space<vmem>>, vector<8x8x32xf32>
    %cst_22 = arith.constant dense<0xFF800000> : vector<8x8x32xf32>
    %29 = vector.multi_reduction <maximumf>, %23, %cst_22 [1] : vector<8x1x8x32xf32> to vector<8x8x32xf32>
    %30 = arith.maximumf %28, %29 : vector<8x8x32xf32>
    %c0_23 = arith.constant 0 : index
    %c0_24 = arith.constant 0 : index
    %c0_25 = arith.constant 0 : index
    %31 = vector.load %arg13[%c0_23, %c0_24, %c0_25] : memref<8x8x32xf32, #tpu.memory_space<vmem>>, vector<8x8x32xf32>
    tpu.vector_store %arg13[%c0_23, %c0_24, %c0_25], %30 {strides = array<i32>} : memref<8x8x32xf32, #tpu.memory_space<vmem>>, vector<8x8x32xf32>,
    %c0_i32_26 = arith.constant 0 : i32
    %32 = arith.cmpi eq, %arg1, %c0_i32_26 : i32
    %33 = arith.extui %32 : i1 to i32
    %c0_i32_27 = arith.constant 0 : i32
    %34 = arith.cmpi ne, %33, %c0_i32_27 : i32
    scf.if %34 {
      %c0_28 = arith.constant 0 : index
      %c0_29 = arith.constant 0 : index
      %c0_30 = arith.constant 0 : index
      %35 = vector.load %arg12[%c0_28, %c0_29, %c0_30] : memref<8x8x32xf32, #tpu.memory_space<vmem>>, vector<8x8x32xf32>
      %cst_31 = arith.constant dense<0xFF800000> : vector<8x32xf32>
      %36 = vector.multi_reduction <maximumf>, %35, %cst_31 [1] : vector<8x8x32xf32> to vector<8x32xf32>
      %c0_32 = arith.constant 0 : index
      %c0_33 = arith.constant 0 : index
      %c0_34 = arith.constant 0 : index
      %37 = vector.load %arg13[%c0_32, %c0_33, %c0_34] : memref<8x8x32xf32, #tpu.memory_space<vmem>>, vector<8x8x32xf32>
      %cst_35 = arith.constant dense<0xFF800000> : vector<8x32xf32>
      %38 = vector.multi_reduction <maximumf>, %37, %cst_35 [1] : vector<8x8x32xf32> to vector<8x32xf32>
      %c0_36 = arith.constant 0 : index
      %c0_37 = arith.constant 0 : index
      %39 = vector.load %arg5[%c0_36, %c0_37] : memref<32x128xf32, #tpu.memory_space<vmem>>, vector<32x128xf32>
      %cst_38 = arith.constant dense<0.000000e+00> : vector<8x128xf32>
      %40 = tpu.matmul %36, %39, %cst_38 {dimension_numbers = #tpu.dot_dimension_numbers<[1], [0], [0], [1], [0, 0, 1, 1], [], []>} : vector<8x32xf32>, vector<32x128xf32>, vector<8x128xf32> -> vector<8x128xf32>
      %c0_39 = arith.constant 0 : index
      %c0_40 = arith.constant 0 : index
      %41 = vector.load %arg6[%c0_39, %c0_40] : memref<32x128xf32, #tpu.memory_space<vmem>>, vector<32x128xf32>
      %cst_41 = arith.constant dense<0.000000e+00> : vector<8x128xf32>
      %42 = tpu.matmul %38, %41, %cst_41 {dimension_numbers = #tpu.dot_dimension_numbers<[1], [0], [0], [1], [0, 0, 1, 1], [], []>} : vector<8x32xf32>, vector<32x128xf32>, vector<8x128xf32> -> vector<8x128xf32>
      %43 = arith.addf %40, %42 : vector<8x128xf32>
      %c0_42 = arith.constant 0 : index
      %c0_43 = arith.constant 0 : index
      %44 = vector.load %arg7[%c0_42, %c0_43] : memref<1x128xf32, #tpu.memory_space<vmem>>, vector<1x128xf32>
      %45 = vector.broadcast %44 : vector<1x128xf32> to vector<8x128xf32>
      %46 = arith.addf %43, %45 : vector<8x128xf32>
      %cst_44 = arith.constant 0.000000e+00 : f32
      %47 = vector.broadcast %cst_44 : f32 to vector<8x128xf32>
      %48 = arith.maximumf %46, %47 : vector<8x128xf32>
      %c0_45 = arith.constant 0 : index
      %c0_46 = arith.constant 0 : index
      %49 = vector.load %arg8[%c0_45, %c0_46] : memref<128x128xf32, #tpu.memory_space<vmem>>, vector<128x128xf32>
      %cst_47 = arith.constant dense<0.000000e+00> : vector<8x128xf32>
      %50 = tpu.matmul %48, %49, %cst_47 {dimension_numbers = #tpu.dot_dimension_numbers<[1], [0], [0], [1], [0, 0, 1, 1], [], []>} : vector<8x128xf32>, vector<128x128xf32>, vector<8x128xf32> -> vector<8x128xf32>
      %c0_48 = arith.constant 0 : index
      %c0_49 = arith.constant 0 : index
      %51 = vector.load %arg9[%c0_48, %c0_49] : memref<1x128xf32, #tpu.memory_space<vmem>>, vector<1x128xf32>
      %52 = vector.broadcast %51 : vector<1x128xf32> to vector<8x128xf32>
      %53 = arith.addf %50, %52 : vector<8x128xf32>
      %c0_50 = arith.constant 0 : index
      %c0_51 = arith.constant 0 : index
      %54 = vector.load %arg11[%c0_50, %c0_51] : memref<8x128xf32, #tpu.memory_space<vmem>>, vector<8x128xf32>
      tpu.vector_store %arg11[%c0_50, %c0_51], %48 {strides = array<i32>} : memref<8x128xf32, #tpu.memory_space<vmem>>, vector<8x128xf32>,
      %c0_52 = arith.constant 0 : index
      %c0_53 = arith.constant 0 : index
      %55 = vector.load %arg10[%c0_52, %c0_53] : memref<8x128xf32, #tpu.memory_space<vmem>>, vector<8x128xf32>
      tpu.vector_store %arg10[%c0_52, %c0_53], %53 {strides = array<i32>} : memref<8x128xf32, #tpu.memory_space<vmem>>, vector<8x128xf32>,
    } else {
    }
    return
  }
  func.func @transform_0(%arg0: i32, %arg1: i32) -> (i32, i32, i32) {
    %c0_i32 = arith.constant 0 : i32
    %c0_i32_0 = arith.constant 0 : i32
    return %arg0, %arg1, %c0_i32 : i32, i32, i32
  }
  func.func @transform_1(%arg0: i32, %arg1: i32) -> (i32, i32, i32) {
    %c0_i32 = arith.constant 0 : i32
    %c0_i32_0 = arith.constant 0 : i32
    return %arg1, %arg0, %c0_i32 : i32, i32, i32
  }
  func.func @transform_2(%arg0: i32, %arg1: i32) -> (i32, i32, i32) {
    %c0_i32 = arith.constant 0 : i32
    %c0_i32_0 = arith.constant 0 : i32
    return %arg1, %arg0, %c0_i32 : i32, i32, i32
  }
  func.func @transform_3(%arg0: i32, %arg1: i32) -> (i32, i32) {
    %c0_i32 = arith.constant 0 : i32
    %c0_i32_0 = arith.constant 0 : i32
    %c0_i32_1 = arith.constant 0 : i32
    return %c0_i32, %c0_i32_0 : i32, i32
  }
  func.func @transform_4(%arg0: i32, %arg1: i32) -> (i32, i32) {
    %c0_i32 = arith.constant 0 : i32
    %c0_i32_0 = arith.constant 0 : i32
    %c0_i32_1 = arith.constant 0 : i32
    return %c0_i32, %c0_i32_0 : i32, i32
  }
  func.func @transform_5(%arg0: i32, %arg1: i32) -> (i32, i32) {
    %c0_i32 = arith.constant 0 : i32
    %c0_i32_0 = arith.constant 0 : i32
    %c0_i32_1 = arith.constant 0 : i32
    return %c0_i32, %c0_i32_0 : i32, i32
  }
  func.func @transform_6(%arg0: i32, %arg1: i32) -> (i32, i32) {
    %c0_i32 = arith.constant 0 : i32
    %c0_i32_0 = arith.constant 0 : i32
    %c0_i32_1 = arith.constant 0 : i32
    return %c0_i32, %c0_i32_0 : i32, i32
  }
  func.func @transform_7(%arg0: i32, %arg1: i32) -> (i32, i32) {
    %c0_i32 = arith.constant 0 : i32
    %c0_i32_0 = arith.constant 0 : i32
    %c0_i32_1 = arith.constant 0 : i32
    return %c0_i32, %c0_i32_0 : i32, i32
  }
  func.func @transform_8(%arg0: i32, %arg1: i32) -> (i32, i32) {
    %c0_i32 = arith.constant 0 : i32
    %c0_i32_0 = arith.constant 0 : i32
    return %arg0, %c0_i32 : i32, i32
  }
  func.func @transform_9(%arg0: i32, %arg1: i32) -> (i32, i32) {
    %c0_i32 = arith.constant 0 : i32
    %c0_i32_0 = arith.constant 0 : i32
    return %arg0, %c0_i32 : i32, i32
  }
}

</mosaic_0001>

<llo_original>
// kernel: concat_nonlinear.1
$region0: #{concat_nonlinear.1}
  #allocation0 [shape = 'u32[]', space=smem, size = 0x4, offset = 0x4, fixed_abs, tag = 'smem constant byte address 0x4 - core index']
  #allocation1 [shape = 'u32[144,128]{1,0:T(1,128)}', space=vmem, size = 0x12000, scoped, tag = 'internal scratch']
  #allocation2 [shape = 'f32[8,8,32]{2,1,0:T(8,128)}', space=vmem, size = 0x8000, scoped, tag = 'scratch operand']
  #allocation3 [shape = 'f32[8,8,32]{2,1,0:T(8,128)}', space=vmem, size = 0x8000, scoped, tag = 'scratch operand']
  %s0 = inlined_call_operand.vmem [shape: f32[2,8,32], index: 0, kind: input, shape index: {}]
  %s1 = inlined_call_operand.vmem [shape: f32[1,8,8], index: 1, kind: input, shape index: {}]
  %s2 = inlined_call_operand.vmem [shape: f32[1,8,8], index: 2, kind: input, shape index: {}]
  %s3 = inlined_call_operand.vmem [shape: f32[32,128], index: 3, kind: input, shape index: {}]
  %s4 = inlined_call_operand.vmem [shape: f32[32,128], index: 4, kind: input, shape index: {}]
  %s5 = inlined_call_operand.vmem [shape: f32[1,128], index: 5, kind: input, shape index: {}]
  %s6 = inlined_call_operand.vmem [shape: f32[128,128], index: 6, kind: input, shape index: {}]
  %s7 = inlined_call_operand.vmem [shape: f32[1,128], index: 7, kind: input, shape index: {}]
  %s8 = inlined_call_operand.vmem [shape: f32[8,128], index: 8, kind: output, shape index: {0}]
  %s9 = inlined_call_operand.vmem [shape: f32[8,128], index: 9, kind: output, shape index: {1}]
  %10 = xla_tuple %s8, %s9
  %s11 = sld [smem:[#allocation0]]
  $region58: #{concat_nonlinear.1} parent=0
    _
  %s13 = ssub.s32 1, %s11
  %s14 = scalar_select 0, %s13, %s11
  // Predicated region
  $region2: #{concat_nonlinear.1} parent=0 // pred_check
    _
  $region3: #{concat_nonlinear.1} parent=0 // pred_check_branch
    %16 = sbr.rel (0) target = $region5
  $region4: #{concat_nonlinear.1} parent=0 // pred_region
    _
  $region5: #{concat_nonlinear.1} parent=0 // pred_fallthru
    _
  // Predicated region
  $region6: #{concat_nonlinear.1} parent=0 // pred_check
    _
  $region7: #{concat_nonlinear.1} parent=0 // pred_check_branch
    %18 = sbr.rel (0) target = $region9
  $region8: #{concat_nonlinear.1} parent=0 // pred_region
    _
  $region9: #{concat_nonlinear.1} parent=0 // pred_fallthru
    _
  // Predicated region
  $region10: #{concat_nonlinear.1} parent=0 // pred_check
    _
  $region11: #{concat_nonlinear.1} parent=0 // pred_check_branch
    %20 = sbr.rel (0) target = $region13
  $region12: #{concat_nonlinear.1} parent=0 // pred_region
    _
  $region13: #{concat_nonlinear.1} parent=0 // pred_fallthru
    _
  // Predicated region
  $region14: #{concat_nonlinear.1} parent=0 // pred_check
    _
  $region15: #{concat_nonlinear.1} parent=0 // pred_check_branch
    %22 = sbr.rel (0) target = $region17
  $region16: #{concat_nonlinear.1} parent=0 // pred_region
    _
  $region17: #{concat_nonlinear.1} parent=0 // pred_fallthru
    _
  // Predicated region
  $region18: #{concat_nonlinear.1} parent=0 // pred_check
    _
  $region19: #{concat_nonlinear.1} parent=0 // pred_check_branch
    %24 = sbr.rel (0) target = $region21
  $region20: #{concat_nonlinear.1} parent=0 // pred_region
    _
  $region21: #{concat_nonlinear.1} parent=0 // pred_fallthru
    _
  // Predicated region
  $region22: #{concat_nonlinear.1} parent=0 // pred_check
    _
  $region23: #{concat_nonlinear.1} parent=0 // pred_check_branch
    %26 = sbr.rel (0) target = $region25
  $region24: #{concat_nonlinear.1} parent=0 // pred_region
    _
  $region25: #{concat_nonlinear.1} parent=0 // pred_fallthru
    _
  // Predicated region
  $region26: #{concat_nonlinear.1} parent=0 // pred_check
    _
  $region27: #{concat_nonlinear.1} parent=0 // pred_check_branch
    %28 = sbr.rel (0) target = $region29
  $region28: #{concat_nonlinear.1} parent=0 // pred_region
    _
  $region29: #{concat_nonlinear.1} parent=0 // pred_fallthru
    _
  // Predicated region
  $region30: #{concat_nonlinear.1} parent=0 // pred_check
    _
  $region31: #{concat_nonlinear.1} parent=0 // pred_check_branch
    %30 = sbr.rel (0) target = $region33
  $region32: #{concat_nonlinear.1} parent=0 // pred_region
    _
  $region33: #{concat_nonlinear.1} parent=0 // pred_fallthru
    _
  %p31 = scmp.eq.s32.totalorder 0, 0
  // Predicated region
  $region34: #{concat_nonlinear.1} parent=0 // pred_check
    %p32 = pneg %p31
  $region35: #{concat_nonlinear.1} parent=0 // pred_check_branch
    %34 = sbr.rel (%p32) target = $region37
  $region36: #{concat_nonlinear.1} parent=0 // pred_region
    %vm35 = vcmask 261120
    %36 = vst.msk [vmem:[#allocation2] sm:$0xff] %vm35, -inf
    %37 = vst.msk [vmem:[#allocation2 + $0x8] sm:$0xff] %vm35, -inf
    %38 = vst.msk [vmem:[#allocation2 + $0x10] sm:$0xff] %vm35, -inf
    %39 = vst.msk [vmem:[#allocation2 + $0x18] sm:$0xff] %vm35, -inf
    %40 = vst.msk [vmem:[#allocation2 + $0x20] sm:$0xff] %vm35, -inf
    %41 = vst.msk [vmem:[#allocation2 + $0x28] sm:$0xff] %vm35, -inf
    %42 = vst.msk [vmem:[#allocation2 + $0x30] sm:$0xff] %vm35, -inf
    %43 = vst.msk [vmem:[#allocation2 + $0x38] sm:$0xff] %vm35, -inf
    %44 = vst.msk [vmem:[#allocation3] sm:$0xff] %vm35, -inf
    %45 = vst.msk [vmem:[#allocation3 + $0x8] sm:$0xff] %vm35, -inf
    %46 = vst.msk [vmem:[#allocation3 + $0x10] sm:$0xff] %vm35, -inf
    %47 = vst.msk [vmem:[#allocation3 + $0x18] sm:$0xff] %vm35, -inf
    %48 = vst.msk [vmem:[#allocation3 + $0x20] sm:$0xff] %vm35, -inf
    %49 = vst.msk [vmem:[#allocation3 + $0x28] sm:$0xff] %vm35, -inf
    %50 = vst.msk [vmem:[#allocation3 + $0x30] sm:$0xff] %vm35, -inf
    %51 = vst.msk [vmem:[#allocation3 + $0x38] sm:$0xff] %vm35, -inf
  $region37: #{concat_nonlinear.1} parent=0 // pred_fallthru
    _
  %v52 = vld [vmem:[%s0] sm:$0xff]
  %v53 = vld [vmem:[%s0 + $0x8] sm:$0xff]
  %v54 = vld [vmem:[%s0 + $0x10] sm:$0xff]
  %v55 = vld [vmem:[%s0 + $0x18] sm:$0xff]
  %v56 = vld [vmem:[%s0 + $0x20] sm:$0xff]
  %v57 = vld [vmem:[%s0 + $0x28] sm:$0xff]
  %v58 = vld [vmem:[%s0 + $0x30] sm:$0xff]
  %v59 = vld [vmem:[%s0 + $0x38] sm:$0xff]
  %v60 = vld [vmem:[%s1] sm:$0xff]
  %v61 = vlaneseq
  %v62 = vshrl.u32 %v61, 7
  %v63 = vsub.s32 0, %v62
  %v64 = vrot.slane %v60, %v63
  %66 = vbcast.lane.b32.xlu0 %v64, 256
  %v67 = vpop.permute.xlu0 %66
  %v68 = vlaneseq
  %v69 = vshrl.u32 %v68, 7
  %v70 = vsub.s32 1, %v69
  %v71 = vrot.slane %v60, %v70
  %73 = vbcast.lane.b32.xlu0 %v71, 256
  %v74 = vpop.permute.xlu0 %73
  %v75 = vlaneseq
  %v76 = vshrl.u32 %v75, 7
  %v77 = vsub.s32 2, %v76
  %v78 = vrot.slane %v60, %v77
  %80 = vbcast.lane.b32.xlu0 %v78, 256
  %v81 = vpop.permute.xlu0 %80
  %v82 = vlaneseq
  %v83 = vshrl.u32 %v82, 7
  %v84 = vsub.s32 3, %v83
  %v85 = vrot.slane %v60, %v84
  %87 = vbcast.lane.b32.xlu0 %v85, 256
  %v88 = vpop.permute.xlu0 %87
  %v89 = vlaneseq
  %v90 = vshrl.u32 %v89, 7
  %v91 = vsub.s32 4, %v90
  %v92 = vrot.slane %v60, %v91
  %94 = vbcast.lane.b32.xlu0 %v92, 256
  %v95 = vpop.permute.xlu0 %94
  %v96 = vlaneseq
  %v97 = vshrl.u32 %v96, 7
  %v98 = vsub.s32 5, %v97
  %v99 = vrot.slane %v60, %v98
  %101 = vbcast.lane.b32.xlu0 %v99, 256
  %v102 = vpop.permute.xlu0 %101
  %v103 = vlaneseq
  %v104 = vshrl.u32 %v103, 7
  %v105 = vsub.s32 6, %v104
  %v106 = vrot.slane %v60, %v105
  %108 = vbcast.lane.b32.xlu0 %v106, 256
  %v109 = vpop.permute.xlu0 %108
  %v110 = vlaneseq
  %v111 = vshrl.u32 %v110, 7
  %v112 = vsub.s32 7, %v111
  %v113 = vrot.slane %v60, %v112
  %115 = vbcast.lane.b32.xlu0 %v113, 256
  %v116 = vpop.permute.xlu0 %115
  %v117 = vld [vmem:[%s2] sm:$0xff]
  %v118 = vlaneseq
  %v119 = vshrl.u32 %v118, 7
  %v120 = vsub.s32 0, %v119
  %v121 = vrot.slane %v117, %v120
  %123 = vbcast.lane.b32.xlu0 %v121, 256
  %v124 = vpop.permute.xlu0 %123
  %v125 = vlaneseq
  %v126 = vshrl.u32 %v125, 7
  %v127 = vsub.s32 1, %v126
  %v128 = vrot.slane %v117, %v127
  %130 = vbcast.lane.b32.xlu0 %v128, 256
  %v131 = vpop.permute.xlu0 %130
  %v132 = vlaneseq
  %v133 = vshrl.u32 %v132, 7
  %v134 = vsub.s32 2, %v133
  %v135 = vrot.slane %v117, %v134
  %137 = vbcast.lane.b32.xlu0 %v135, 256
  %v138 = vpop.permute.xlu0 %137
  %v139 = vlaneseq
  %v140 = vshrl.u32 %v139, 7
  %v141 = vsub.s32 3, %v140
  %v142 = vrot.slane %v117, %v141
  %144 = vbcast.lane.b32.xlu0 %v142, 256
  %v145 = vpop.permute.xlu0 %144
  %v146 = vlaneseq
  %v147 = vshrl.u32 %v146, 7
  %v148 = vsub.s32 4, %v147
  %v149 = vrot.slane %v117, %v148
  %151 = vbcast.lane.b32.xlu0 %v149, 256
  %v152 = vpop.permute.xlu0 %151
  %v153 = vlaneseq
  %v154 = vshrl.u32 %v153, 7
  %v155 = vsub.s32 5, %v154
  %v156 = vrot.slane %v117, %v155
  %158 = vbcast.lane.b32.xlu0 %v156, 256
  %v159 = vpop.permute.xlu0 %158
  %v160 = vlaneseq
  %v161 = vshrl.u32 %v160, 7
  %v162 = vsub.s32 6, %v161
  %v163 = vrot.slane %v117, %v162
  %165 = vbcast.lane.b32.xlu0 %v163, 256
  %v166 = vpop.permute.xlu0 %165
  %v167 = vlaneseq
  %v168 = vshrl.u32 %v167, 7
  %v169 = vsub.s32 7, %v168
  %v170 = vrot.slane %v117, %v169
  %172 = vbcast.lane.b32.xlu0 %v170, 256
  %v173 = vpop.permute.xlu0 %172
  %vm174 = vcmp.gt.f32.partialorder %v67, 0.0
  %vm175 = vcmp.gt.f32.partialorder %v74, 0.0
  %vm176 = vcmp.gt.f32.partialorder %v81, 0.0
  %vm177 = vcmp.gt.f32.partialorder %v88, 0.0
  %vm178 = vcmp.gt.f32.partialorder %v95, 0.0
  %vm179 = vcmp.gt.f32.partialorder %v102, 0.0
  %vm180 = vcmp.gt.f32.partialorder %v109, 0.0
  %vm181 = vcmp.gt.f32.partialorder %v116, 0.0
  %v182 = vsel %vm174, 1, 0
  %v183 = vsel %vm175, 1, 0
  %v184 = vsel %vm176, 1, 0
  %v185 = vsel %vm177, 1, 0
  %v186 = vsel %vm178, 1, 0
  %v187 = vsel %vm179, 1, 0
  %v188 = vsel %vm180, 1, 0
  %v189 = vsel %vm181, 1, 0
  %vm190 = vcmp.eq.s32.totalorder %v182, 1
  %vm191 = vcmp.eq.s32.totalorder %v183, 1
  %vm192 = vcmp.eq.s32.totalorder %v184, 1
  %vm193 = vcmp.eq.s32.totalorder %v185, 1
  %vm194 = vcmp.eq.s32.totalorder %v186, 1
  %vm195 = vcmp.eq.s32.totalorder %v187, 1
  %vm196 = vcmp.eq.s32.totalorder %v188, 1
  %vm197 = vcmp.eq.s32.totalorder %v189, 1
  %v198 = vsel %vm190, %v52, -1000.0
  %v199 = vsel %vm191, %v53, -1000.0
  %v200 = vsel %vm192, %v54, -1000.0
  %v201 = vsel %vm193, %v55, -1000.0
  %v202 = vsel %vm194, %v56, -1000.0
  %v203 = vsel %vm195, %v57, -1000.0
  %v204 = vsel %vm196, %v58, -1000.0
  %v205 = vsel %vm197, %v59, -1000.0
  %vm206 = vcmp.gt.f32.partialorder %v124, 0.0
  %vm207 = vcmp.gt.f32.partialorder %v131, 0.0
  %vm208 = vcmp.gt.f32.partialorder %v138, 0.0
  %vm209 = vcmp.gt.f32.partialorder %v145, 0.0
  %vm210 = vcmp.gt.f32.partialorder %v152, 0.0
  %vm211 = vcmp.gt.f32.partialorder %v159, 0.0
  %vm212 = vcmp.gt.f32.partialorder %v166, 0.0
  %vm213 = vcmp.gt.f32.partialorder %v173, 0.0
  %v214 = vsel %vm206, 1, 0
  %v215 = vsel %vm207, 1, 0
  %v216 = vsel %vm208, 1, 0
  %v217 = vsel %vm209, 1, 0
  %v218 = vsel %vm210, 1, 0
  %v219 = vsel %vm211, 1, 0
  %v220 = vsel %vm212, 1, 0
  %v221 = vsel %vm213, 1, 0
  %vm222 = vcmp.eq.s32.totalorder %v214, 1
  %vm223 = vcmp.eq.s32.totalorder %v215, 1
  %vm224 = vcmp.eq.s32.totalorder %v216, 1
  %vm225 = vcmp.eq.s32.totalorder %v217, 1
  %vm226 = vcmp.eq.s32.totalorder %v218, 1
  %vm227 = vcmp.eq.s32.totalorder %v219, 1
  %vm228 = vcmp.eq.s32.totalorder %v220, 1
  %vm229 = vcmp.eq.s32.totalorder %v221, 1
  %v230 = vsel %vm222, %v52, -1000.0
  %v231 = vsel %vm223, %v53, -1000.0
  %v232 = vsel %vm224, %v54, -1000.0
  %v233 = vsel %vm225, %v55, -1000.0
  %v234 = vsel %vm226, %v56, -1000.0
  %v235 = vsel %vm227, %v57, -1000.0
  %v236 = vsel %vm228, %v58, -1000.0
  %v237 = vsel %vm229, %v59, -1000.0
  %v238 = vld [vmem:[#allocation2] sm:$0xff]
  %v239 = vld [vmem:[#allocation2 + $0x8] sm:$0xff]
  %v240 = vld [vmem:[#allocation2 + $0x10] sm:$0xff]
  %v241 = vld [vmem:[#allocation2 + $0x18] sm:$0xff]
  %v242 = vld [vmem:[#allocation2 + $0x20] sm:$0xff]
  %v243 = vld [vmem:[#allocation2 + $0x28] sm:$0xff]
  %v244 = vld [vmem:[#allocation2 + $0x30] sm:$0xff]
  %v245 = vld [vmem:[#allocation2 + $0x38] sm:$0xff]
  %v246 = vmax.f32 %v238, %v198
  %v247 = vmax.f32 %v239, %v199
  %v248 = vmax.f32 %v240, %v200
  %v249 = vmax.f32 %v241, %v201
  %v250 = vmax.f32 %v242, %v202
  %v251 = vmax.f32 %v243, %v203
  %v252 = vmax.f32 %v244, %v204
  %v253 = vmax.f32 %v245, %v205
  %vm254 = vcmask 261120
  %255 = vst.msk [vmem:[#allocation2] sm:$0xff] %vm254, %v246
  %256 = vst.msk [vmem:[#allocation2 + $0x8] sm:$0xff] %vm254, %v247
  %257 = vst.msk [vmem:[#allocation2 + $0x10] sm:$0xff] %vm254, %v248
  %258 = vst.msk [vmem:[#allocation2 + $0x18] sm:$0xff] %vm254, %v249
  %259 = vst.msk [vmem:[#allocation2 + $0x20] sm:$0xff] %vm254, %v250
  %260 = vst.msk [vmem:[#allocation2 + $0x28] sm:$0xff] %vm254, %v251
  %261 = vst.msk [vmem:[#allocation2 + $0x30] sm:$0xff] %vm254, %v252
  %262 = vst.msk [vmem:[#allocation2 + $0x38] sm:$0xff] %vm254, %v253
  %v263 = vld [vmem:[#allocation3] sm:$0xff]
  %v264 = vld [vmem:[#allocation3 + $0x8] sm:$0xff]
  %v265 = vld [vmem:[#allocation3 + $0x10] sm:$0xff]
  %v266 = vld [vmem:[#allocation3 + $0x18] sm:$0xff]
  %v267 = vld [vmem:[#allocation3 + $0x20] sm:$0xff]
  %v268 = vld [vmem:[#allocation3 + $0x28] sm:$0xff]
  %v269 = vld [vmem:[#allocation3 + $0x30] sm:$0xff]
  %v270 = vld [vmem:[#allocation3 + $0x38] sm:$0xff]
  %v271 = vmax.f32 %v263, %v230
  %v272 = vmax.f32 %v264, %v231
  %v273 = vmax.f32 %v265, %v232
  %v274 = vmax.f32 %v266, %v233
  %v275 = vmax.f32 %v267, %v234
  %v276 = vmax.f32 %v268, %v235
  %v277 = vmax.f32 %v269, %v236
  %v278 = vmax.f32 %v270, %v237
  %279 = vst.msk [vmem:[#allocation3] sm:$0xff] %vm254, %v271
  %280 = vst.msk [vmem:[#allocation3 + $0x8] sm:$0xff] %vm254, %v272
  %281 = vst.msk [vmem:[#allocation3 + $0x10] sm:$0xff] %vm254, %v273
  %282 = vst.msk [vmem:[#allocation3 + $0x18] sm:$0xff] %vm254, %v274
  %283 = vst.msk [vmem:[#allocation3 + $0x20] sm:$0xff] %vm254, %v275
  %284 = vst.msk [vmem:[#allocation3 + $0x28] sm:$0xff] %vm254, %v276
  %285 = vst.msk [vmem:[#allocation3 + $0x30] sm:$0xff] %vm254, %v277
  %286 = vst.msk [vmem:[#allocation3 + $0x38] sm:$0xff] %vm254, %v278
  // Predicated region
  $region38: #{concat_nonlinear.1} parent=0 // pred_check
    %p287 = pneg %p31
  $region39: #{concat_nonlinear.1} parent=0 // pred_check_branch
    %289 = sbr.rel (%p287) target = $region41
  $region40: #{concat_nonlinear.1} parent=0 // pred_region
    %v290 = vld [vmem:[#allocation2] sm:$0xff]
    %v291 = vld [vmem:[#allocation2 + $0x8] sm:$0xff]
    %v292 = vld [vmem:[#allocation2 + $0x10] sm:$0xff]
    %v293 = vld [vmem:[#allocation2 + $0x18] sm:$0xff]
    %v294 = vld [vmem:[#allocation2 + $0x20] sm:$0xff]
    %v295 = vld [vmem:[#allocation2 + $0x28] sm:$0xff]
    %v296 = vld [vmem:[#allocation2 + $0x30] sm:$0xff]
    %v297 = vld [vmem:[#allocation2 + $0x38] sm:$0xff]
    %v298 = vsel %vm254, %v290, -inf
    %v299 = vrot.slane %v298, 4
    %v300 = vmax.f32 %v298, %v299
    %v301 = vrot.slane %v300, 2
    %v302 = vmax.f32 %v300, %v301
    %v303 = vrot.slane %v302, 1
    %v304 = vmax.f32 %v302, %v303
    %v305 = vsel %vm254, %v291, -inf
    %v306 = vrot.slane %v305, 4
    %v307 = vmax.f32 %v305, %v306
    %v308 = vrot.slane %v307, 2
    %v309 = vmax.f32 %v307, %v308
    %v310 = vrot.slane %v309, 1
    %v311 = vmax.f32 %v309, %v310
    %v312 = vsel %vm254, %v292, -inf
    %v313 = vrot.slane %v312, 4
    %v314 = vmax.f32 %v312, %v313
    %v315 = vrot.slane %v314, 2
    %v316 = vmax.f32 %v314, %v315
    %v317 = vrot.slane %v316, 1
    %v318 = vmax.f32 %v316, %v317
    %v319 = vsel %vm254, %v293, -inf
    %v320 = vrot.slane %v319, 4
    %v321 = vmax.f32 %v319, %v320
    %v322 = vrot.slane %v321, 2
    %v323 = vmax.f32 %v321, %v322
    %v324 = vrot.slane %v323, 1
    %v325 = vmax.f32 %v323, %v324
    %v326 = vsel %vm254, %v294, -inf
    %v327 = vrot.slane %v326, 4
    %v328 = vmax.f32 %v326, %v327
    %v329 = vrot.slane %v328, 2
    %v330 = vmax.f32 %v328, %v329
    %v331 = vrot.slane %v330, 1
    %v332 = vmax.f32 %v330, %v331
    %v333 = vsel %vm254, %v295, -inf
    %v334 = vrot.slane %v333, 4
    %v335 = vmax.f32 %v333, %v334
    %v336 = vrot.slane %v335, 2
    %v337 = vmax.f32 %v335, %v336
    %v338 = vrot.slane %v337, 1
    %v339 = vmax.f32 %v337, %v338
    %v340 = vsel %vm254, %v296, -inf
    %v341 = vrot.slane %v340, 4
    %v342 = vmax.f32 %v340, %v341
    %v343 = vrot.slane %v342, 2
    %v344 = vmax.f32 %v342, %v343
    %v345 = vrot.slane %v344, 1
    %v346 = vmax.f32 %v344, %v345
    %v347 = vsel %vm254, %v297, -inf
    %v348 = vrot.slane %v347, 4
    %v349 = vmax.f32 %v347, %v348
    %v350 = vrot.slane %v349, 2
    %v351 = vmax.f32 %v349, %v350
    %v352 = vrot.slane %v351, 1
    %v353 = vmax.f32 %v351, %v352
    %v354 = vld [vmem:[#allocation3] sm:$0xff]
    %v355 = vld [vmem:[#allocation3 + $0x8] sm:$0xff]
    %v356 = vld [vmem:[#allocation3 + $0x10] sm:$0xff]
    %v357 = vld [vmem:[#allocation3 + $0x18] sm:$0xff]
    %v358 = vld [vmem:[#allocation3 + $0x20] sm:$0xff]
    %v359 = vld [vmem:[#allocation3 + $0x28] sm:$0xff]
    %v360 = vld [vmem:[#allocation3 + $0x30] sm:$0xff]
    %v361 = vld [vmem:[#allocation3 + $0x38] sm:$0xff]
    %v362 = vsel %vm254, %v354, -inf
    %v363 = vrot.slane %v362, 4
    %v364 = vmax.f32 %v362, %v363
    %v365 = vrot.slane %v364, 2
    %v366 = vmax.f32 %v364, %v365
    %v367 = vrot.slane %v366, 1
    %v368 = vmax.f32 %v366, %v367
    %v369 = vsel %vm254, %v355, -inf
    %v370 = vrot.slane %v369, 4
    %v371 = vmax.f32 %v369, %v370
    %v372 = vrot.slane %v371, 2
    %v373 = vmax.f32 %v371, %v372
    %v374 = vrot.slane %v373, 1
    %v375 = vmax.f32 %v373, %v374
    %v376 = vsel %vm254, %v356, -inf
    %v377 = vrot.slane %v376, 4
    %v378 = vmax.f32 %v376, %v377
    %v379 = vrot.slane %v378, 2
    %v380 = vmax.f32 %v378, %v379
    %v381 = vrot.slane %v380, 1
    %v382 = vmax.f32 %v380, %v381
    %v383 = vsel %vm254, %v357, -inf
    %v384 = vrot.slane %v383, 4
    %v385 = vmax.f32 %v383, %v384
    %v386 = vrot.slane %v385, 2
    %v387 = vmax.f32 %v385, %v386
    %v388 = vrot.slane %v387, 1
    %v389 = vmax.f32 %v387, %v388
    %v390 = vsel %vm254, %v358, -inf
    %v391 = vrot.slane %v390, 4
    %v392 = vmax.f32 %v390, %v391
    %v393 = vrot.slane %v392, 2
    %v394 = vmax.f32 %v392, %v393
    %v395 = vrot.slane %v394, 1
    %v396 = vmax.f32 %v394, %v395
    %v397 = vsel %vm254, %v359, -inf
    %v398 = vrot.slane %v397, 4
    %v399 = vmax.f32 %v397, %v398
    %v400 = vrot.slane %v399, 2
    %v401 = vmax.f32 %v399, %v400
    %v402 = vrot.slane %v401, 1
    %v403 = vmax.f32 %v401, %v402
    %v404 = vsel %vm254, %v360, -inf
    %v405 = vrot.slane %v404, 4
    %v406 = vmax.f32 %v404, %v405
    %v407 = vrot.slane %v406, 2
    %v408 = vmax.f32 %v406, %v407
    %v409 = vrot.slane %v408, 1
    %v410 = vmax.f32 %v408, %v409
    %v411 = vsel %vm254, %v361, -inf
    %v412 = vrot.slane %v411, 4
    %v413 = vmax.f32 %v411, %v412
    %v414 = vrot.slane %v413, 2
    %v415 = vmax.f32 %v413, %v414
    %v416 = vrot.slane %v415, 1
    %v417 = vmax.f32 %v415, %v416
    %v418 = vld [vmem:[%s3] sm:$0xff]
    %v419 = vld [vmem:[%s3 + $0x8] sm:$0xff]
    %v420 = vld [vmem:[%s3 + $0x10] sm:$0xff]
    %v421 = vld [vmem:[%s3 + $0x18] sm:$0xff]
    %v422 = vld [vmem:[%s4] sm:$0xff]
    %v423 = vld [vmem:[%s4 + $0x8] sm:$0xff]
    %v424 = vld [vmem:[%s4 + $0x10] sm:$0xff]
    %v425 = vld [vmem:[%s4 + $0x18] sm:$0xff]
    %vm434 = vcmask 1041409
    %v435 = vsel %vm434, %v375, %v368
    %vm436 = vcmask 1042434
    %v437 = vsel %vm436, %v382, %v435
    %vm438 = vcmask 1043459
    %v439 = vsel %vm438, %v389, %v437
    %vm440 = vcmask 1044484
    %v441 = vsel %vm440, %v396, %v439
    %vm442 = vcmask 1045509
    %v443 = vsel %vm442, %v403, %v441
    %vm444 = vcmask 1046534
    %v445 = vsel %vm444, %v410, %v443
    %vm446 = vcmask 1047559
    %v447 = vsel %vm446, %v417, %v445
    %v448 = vsel %vm254, %v447, 0
    %450 = vmatprep.subr.mxu0 0.0
    %451 = vmatpush1.msra.mxu0 %v422
    %452 = vmatprep.subr.mxu0 0.0
    %453 = vmatpush1.msra.mxu0 %v423
    %454 = vmatprep.subr.mxu0 0.0
    %455 = vmatpush1.msra.mxu0 %v424
    %456 = vmatprep.subr.mxu0 0.0
    %457 = vmatpush1.msra.mxu0 %v425
    %458 = vmatprep.subr.mxu0 0.0
    %459 = vmatpush1.msra.mxu0 0.0
    %460 = vmatprep.subr.mxu0 0.0
    %461 = vmatpush1.msra.mxu0 0.0
    %462 = vmatprep.subr.mxu0 0.0
    %463 = vmatpush1.msra.mxu0 0.0
    %464 = vmatprep.subr.mxu0 0.0
    %465 = vmatpush1.msra.mxu0 0.0
    %466 = vmatprep.subr.mxu0 0.0
    %467 = vmatpush1.msra.mxu0 0.0
    %468 = vmatprep.subr.mxu0 0.0
    %469 = vmatpush1.msra.mxu0 0.0
    %470 = vmatprep.subr.mxu0 0.0
    %471 = vmatpush1.msra.mxu0 0.0
    %472 = vmatprep.subr.mxu0 0.0
    %473 = vmatpush1.msra.mxu0 0.0
    %474 = vmatprep.subr.mxu0 0.0
    %475 = vmatpush1.msra.mxu0 0.0
    %476 = vmatprep.subr.mxu0 0.0
    %477 = vmatpush1.msra.mxu0 0.0
    %478 = vmatprep.subr.mxu0 0.0
    %479 = vmatpush1.msra.mxu0 0.0
    %480 = vmatprep.subr.mxu0 0.0
    %481 = vmatpush1.msra.mxu0 0.0
    %482 = vmatprep.subr.mxu0 0.0
    %483 = vmatpush1.msra.mxu0 0.0
    %484 = vmatprep.subr.mxu0 0.0
    %485 = vmatpush1.msra.mxu0 0.0
    %486 = vmatprep.subr.mxu0 0.0
    %487 = vmatpush1.msra.mxu0 0.0
    %488 = vmatprep.subr.mxu0 0.0
    %489 = vmatpush1.msra.mxu0 0.0
    %490 = vmatprep.subr.mxu0 0.0
    %491 = vmatpush1.msra.mxu0 0.0
    %492 = vmatprep.subr.mxu0 0.0
    %493 = vmatpush1.msra.mxu0 0.0
    %494 = vmatprep.subr.mxu0 0.0
    %495 = vmatpush1.msra.mxu0 0.0
    %496 = vmatprep.subr.mxu0 0.0
    %497 = vmatpush1.msra.mxu0 0.0
    %498 = vmatprep.subr.mxu0 0.0
    %499 = vmatpush1.msra.mxu0 0.0
    %500 = vmatprep.subr.mxu0 0.0
    %501 = vmatpush1.msra.mxu0 0.0
    %502 = vmatprep.subr.mxu0 0.0
    %503 = vmatpush1.msra.mxu0 0.0
    %504 = vmatprep.subr.mxu0 0.0
    %505 = vmatpush1.msra.mxu0 0.0
    %506 = vmatprep.subr.mxu0 0.0
    %507 = vmatpush1.msra.mxu0 0.0
    %508 = vmatprep.subr.mxu0 0.0
    %509 = vmatpush1.msra.mxu0 0.0
    %510 = vmatprep.subr.mxu0 0.0
    %511 = vmatpush1.msra.mxu0 0.0
    %512 = vmatprep.subr.mxu0 0.0
    %513 = vmatpush1.msra.mxu0 0.0
    %514 = vmatprep.mubr.f32.mxu0 0.0
    %515 = vmatmul.mubr.f32.gmra.mrb[0].mxu0 %v448
    %v516 = vpop.f32.mrb[0].mxu0
    %v517 = vadd.f32 0.0, %v516
    %v518 = vpop.f32.mrb[0].mxu0
    %519 = vdwg.mxu0
    %v528 = vsel %vm434, %v311, %v304
    %v529 = vsel %vm436, %v318, %v528
    %v530 = vsel %vm438, %v325, %v529
    %v531 = vsel %vm440, %v332, %v530
    %v532 = vsel %vm442, %v339, %v531
    %v533 = vsel %vm444, %v346, %v532
    %v534 = vsel %vm446, %v353, %v533
    %v535 = vsel %vm254, %v534, 0
    %537 = vmatprep.subr.mxu0 0.0
    %538 = vmatpush1.msra.mxu0 %v418
    %539 = vmatprep.subr.mxu0 0.0
    %540 = vmatpush1.msra.mxu0 %v419
    %541 = vmatprep.subr.mxu0 0.0
    %542 = vmatpush1.msra.mxu0 %v420
    %543 = vmatprep.subr.mxu0 0.0
    %544 = vmatpush1.msra.mxu0 %v421
    %545 = vmatprep.subr.mxu0 0.0
    %546 = vmatpush1.msra.mxu0 0.0
    %547 = vmatprep.subr.mxu0 0.0
    %548 = vmatpush1.msra.mxu0 0.0
    %549 = vmatprep.subr.mxu0 0.0
    %550 = vmatpush1.msra.mxu0 0.0
    %551 = vmatprep.subr.mxu0 0.0
    %552 = vmatpush1.msra.mxu0 0.0
    %553 = vmatprep.subr.mxu0 0.0
    %554 = vmatpush1.msra.mxu0 0.0
    %555 = vmatprep.subr.mxu0 0.0
    %556 = vmatpush1.msra.mxu0 0.0
    %557 = vmatprep.subr.mxu0 0.0
    %558 = vmatpush1.msra.mxu0 0.0
    %559 = vmatprep.subr.mxu0 0.0
    %560 = vmatpush1.msra.mxu0 0.0
    %561 = vmatprep.subr.mxu0 0.0
    %562 = vmatpush1.msra.mxu0 0.0
    %563 = vmatprep.subr.mxu0 0.0
    %564 = vmatpush1.msra.mxu0 0.0
    %565 = vmatprep.subr.mxu0 0.0
    %566 = vmatpush1.msra.mxu0 0.0
    %567 = vmatprep.subr.mxu0 0.0
    %568 = vmatpush1.msra.mxu0 0.0
    %569 = vmatprep.subr.mxu0 0.0
    %570 = vmatpush1.msra.mxu0 0.0
    %571 = vmatprep.subr.mxu0 0.0
    %572 = vmatpush1.msra.mxu0 0.0
    %573 = vmatprep.subr.mxu0 0.0
    %574 = vmatpush1.msra.mxu0 0.0
    %575 = vmatprep.subr.mxu0 0.0
    %576 = vmatpush1.msra.mxu0 0.0
    %577 = vmatprep.subr.mxu0 0.0
    %578 = vmatpush1.msra.mxu0 0.0
    %579 = vmatprep.subr.mxu0 0.0
    %580 = vmatpush1.msra.mxu0 0.0
    %581 = vmatprep.subr.mxu0 0.0
    %582 = vmatpush1.msra.mxu0 0.0
    %583 = vmatprep.subr.mxu0 0.0
    %584 = vmatpush1.msra.mxu0 0.0
    %585 = vmatprep.subr.mxu0 0.0
    %586 = vmatpush1.msra.mxu0 0.0
    %587 = vmatprep.subr.mxu0 0.0
    %588 = vmatpush1.msra.mxu0 0.0
    %589 = vmatprep.subr.mxu0 0.0
    %590 = vmatpush1.msra.mxu0 0.0
    %591 = vmatprep.subr.mxu0 0.0
    %592 = vmatpush1.msra.mxu0 0.0
    %593 = vmatprep.subr.mxu0 0.0
    %594 = vmatpush1.msra.mxu0 0.0
    %595 = vmatprep.subr.mxu0 0.0
    %596 = vmatpush1.msra.mxu0 0.0
    %597 = vmatprep.subr.mxu0 0.0
    %598 = vmatpush1.msra.mxu0 0.0
    %599 = vmatprep.subr.mxu0 0.0
    %600 = vmatpush1.msra.mxu0 0.0
    %601 = vmatprep.mubr.f32.mxu0 0.0
    %602 = vmatmul.mubr.f32.gmra.mrb[0].mxu0 %v535
    %v603 = vpop.f32.mrb[0].mxu0
    %v604 = vadd.f32 %v517, %v603
    %v605 = vpop.f32.mrb[0].mxu0
    %606 = vdwg.mxu0
    %v607 = vld [vmem:[%s5] sm:$0x1]
    %v609 = vlaneseq
    %v610 = vshrl.u32 %v609, 7
    %v611 = vsub.s32 0, %v610
    %v612 = vrot.slane %v607, %v611
    %v614 = vadd.f32 %v604, %v612
    %v615 = vmax.f32 %v614, 0.0
    %v616 = vld [vmem:[%s6] sm:$0xff]
    %v617 = vld [vmem:[%s6 + $0x8] sm:$0xff]
    %v618 = vld [vmem:[%s6 + $0x10] sm:$0xff]
    %v619 = vld [vmem:[%s6 + $0x18] sm:$0xff]
    %v620 = vld [vmem:[%s6 + $0x20] sm:$0xff]
    %v621 = vld [vmem:[%s6 + $0x28] sm:$0xff]
    %v622 = vld [vmem:[%s6 + $0x30] sm:$0xff]
    %v623 = vld [vmem:[%s6 + $0x38] sm:$0xff]
    %v624 = vld [vmem:[%s6 + $0x40] sm:$0xff]
    %v625 = vld [vmem:[%s6 + $0x48] sm:$0xff]
    %v626 = vld [vmem:[%s6 + $0x50] sm:$0xff]
    %v627 = vld [vmem:[%s6 + $0x58] sm:$0xff]
    %v628 = vld [vmem:[%s6 + $0x60] sm:$0xff]
    %v629 = vld [vmem:[%s6 + $0x68] sm:$0xff]
    %v630 = vld [vmem:[%s6 + $0x70] sm:$0xff]
    %v631 = vld [vmem:[%s6 + $0x78] sm:$0xff]
    %v632 = vld [vmem:[%s7] sm:$0x1]
    %v634 = vlaneseq
    %v635 = vshrl.u32 %v634, 7
    %v636 = vsub.s32 0, %v635
    %v637 = vrot.slane %v632, %v636
    %639 = vmatprep.subr.mxu0 0.0
    %640 = vmatpush1.msra.mxu0 %v616
    %641 = vmatprep.subr.mxu0 0.0
    %642 = vmatpush1.msra.mxu0 %v617
    %643 = vmatprep.subr.mxu0 0.0
    %644 = vmatpush1.msra.mxu0 %v618
    %645 = vmatprep.subr.mxu0 0.0
    %646 = vmatpush1.msra.mxu0 %v619
    %647 = vmatprep.subr.mxu0 0.0
    %648 = vmatpush1.msra.mxu0 %v620
    %649 = vmatprep.subr.mxu0 0.0
    %650 = vmatpush1.msra.mxu0 %v621
    %651 = vmatprep.subr.mxu0 0.0
    %652 = vmatpush1.msra.mxu0 %v622
    %653 = vmatprep.subr.mxu0 0.0
    %654 = vmatpush1.msra.mxu0 %v623
    %655 = vmatprep.subr.mxu0 0.0
    %656 = vmatpush1.msra.mxu0 %v624
    %657 = vmatprep.subr.mxu0 0.0
    %658 = vmatpush1.msra.mxu0 %v625
    %659 = vmatprep.subr.mxu0 0.0
    %660 = vmatpush1.msra.mxu0 %v626
    %661 = vmatprep.subr.mxu0 0.0
    %662 = vmatpush1.msra.mxu0 %v627
    %663 = vmatprep.subr.mxu0 0.0
    %664 = vmatpush1.msra.mxu0 %v628
    %665 = vmatprep.subr.mxu0 0.0
    %666 = vmatpush1.msra.mxu0 %v629
    %667 = vmatprep.subr.mxu0 0.0
    %668 = vmatpush1.msra.mxu0 %v630
    %669 = vmatprep.subr.mxu0 0.0
    %670 = vmatpush1.msra.mxu0 %v631
    %671 = vmatprep.subr.mxu0 0.0
    %672 = vmatpush1.msra.mxu0 0.0
    %673 = vmatprep.subr.mxu0 0.0
    %674 = vmatpush1.msra.mxu0 0.0
    %675 = vmatprep.subr.mxu0 0.0
    %676 = vmatpush1.msra.mxu0 0.0
    %677 = vmatprep.subr.mxu0 0.0
    %678 = vmatpush1.msra.mxu0 0.0
    %679 = vmatprep.subr.mxu0 0.0
    %680 = vmatpush1.msra.mxu0 0.0
    %681 = vmatprep.subr.mxu0 0.0
    %682 = vmatpush1.msra.mxu0 0.0
    %683 = vmatprep.subr.mxu0 0.0
    %684 = vmatpush1.msra.mxu0 0.0
    %685 = vmatprep.subr.mxu0 0.0
    %686 = vmatpush1.msra.mxu0 0.0
    %687 = vmatprep.subr.mxu0 0.0
    %688 = vmatpush1.msra.mxu0 0.0
    %689 = vmatprep.subr.mxu0 0.0
    %690 = vmatpush1.msra.mxu0 0.0
    %691 = vmatprep.subr.mxu0 0.0
    %692 = vmatpush1.msra.mxu0 0.0
    %693 = vmatprep.subr.mxu0 0.0
    %694 = vmatpush1.msra.mxu0 0.0
    %695 = vmatprep.subr.mxu0 0.0
    %696 = vmatpush1.msra.mxu0 0.0
    %697 = vmatprep.subr.mxu0 0.0
    %698 = vmatpush1.msra.mxu0 0.0
    %699 = vmatprep.subr.mxu0 0.0
    %700 = vmatpush1.msra.mxu0 0.0
    %701 = vmatprep.subr.mxu0 0.0
    %702 = vmatpush1.msra.mxu0 0.0
    %703 = vmatprep.mubr.f32.mxu0 0.0
    %704 = vmatmul.mubr.f32.gmra.mrb[0].mxu0 %v615
    %v705 = vpop.f32.mrb[0].mxu0
    %v706 = vadd.f32 %v637, %v705
    %v707 = vpop.f32.mrb[0].mxu0
    %708 = vdwg.mxu0
    %709 = vst [vmem:[%s9] sm:$0xff] %v615
    %710 = vst [vmem:[%s8] sm:$0xff] %v706
  $region41: #{concat_nonlinear.1} parent=0 // pred_fallthru
    _
  // Predicated region
  $region42: #{concat_nonlinear.1} parent=0 // pred_check
    _
  $region43: #{concat_nonlinear.1} parent=0 // pred_check_branch
    %712 = sbr.rel (0) target = $region45
  $region44: #{concat_nonlinear.1} parent=0 // pred_region
    _
  $region45: #{concat_nonlinear.1} parent=0 // pred_fallthru
    _
  // Predicated region
  $region46: #{concat_nonlinear.1} parent=0 // pred_check
    _
  $region47: #{concat_nonlinear.1} parent=0 // pred_check_branch
    %714 = sbr.rel (0) target = $region49
  $region48: #{concat_nonlinear.1} parent=0 // pred_region
    _
  $region49: #{concat_nonlinear.1} parent=0 // pred_fallthru
    _
  // Predicated region
  $region50: #{concat_nonlinear.1} parent=0 // pred_check
    _
  $region51: #{concat_nonlinear.1} parent=0 // pred_check_branch
    %716 = sbr.rel (0) target = $region53
  $region52: #{concat_nonlinear.1} parent=0 // pred_region
    _
  $region53: #{concat_nonlinear.1} parent=0 // pred_fallthru
    _
  // Predicated region
  $region54: #{concat_nonlinear.1} parent=0 // pred_check
    _
  $region55: #{concat_nonlinear.1} parent=0 // pred_check_branch
    %718 = sbr.rel (0) target = $region57
  $region56: #{concat_nonlinear.1} parent=0 // pred_region
    _
  $region57: #{concat_nonlinear.1} parent=0 // pred_fallthru
    _

</llo_original>
